<compile_context>
chip_gen: v7x
topology: tpu7x:2x2x1
jax: 0.10.0
libtpu: 0.0.40
codegen_flags: <defaults>
</compile_context>

<pallas_src>
import functools

import jax
import jax.numpy as jnp
from jax.experimental import pallas as pl
from jax.experimental.pallas import tpu as pltpu


def _temporal_block_kernel(K, dilation, padding, has_downsample,
                           x_ref, wc_ref, w2_ref, b1_ref, b2_ref, bd_ref,
                           o_ref, xh_ref, h1h_ref):
    """One (batch, time-tile) grid step.

    x_ref  : (1, C_in, TL)               input tile (channels x time)
    wc_ref : (W_rows, K*C_in)            folded conv1 weight, with the fused
                                         1x1 downsample rows appended when
                                         has_downsample (W_rows = 2*C_out)
    w2_ref : (C_out, K*C_out)            folded conv2 weight
    b1_ref, b2_ref, bd_ref : (C_out, 1)  biases (bd unused if no downsample)
    o_ref  : (1, C_out, TL)              output tile
    xh_ref : (C_in, padding)  f32        carried x left-context (causal halo)
    h1h_ref: (C_out, padding) f32        carried h1 left-context
    """
    t = pl.program_id(1)
    C_out = o_ref.shape[1]
    TL = o_ref.shape[2]
    mxu_dtype = wc_ref.dtype

    # Causal left padding: reset the carried halos at the start of each row.
    @pl.when(t == 0)
    def _():
        xh_ref[...] = jnp.zeros_like(xh_ref)
        h1h_ref[...] = jnp.zeros_like(h1h_ref)

    cur = x_ref[0].astype(jnp.float32)                        # (C_in, TL)
    xw = jnp.concatenate([xh_ref[...], cur], axis=1)          # (C_in, padding+TL)
    xh_ref[...] = xw[:, TL:TL + padding]                      # carry halo to next tile

    # ---- conv1 (+ fused 1x1 downsample), all K taps in one MXU matmul ----
    a1 = jnp.concatenate(
        [xw[:, k * dilation:k * dilation + TL] for k in range(K)],
        axis=0).astype(mxu_dtype)                             # (K*C_in, TL)
    r = jnp.dot(wc_ref[...], a1, preferred_element_type=jnp.float32)
    h1 = jnp.maximum(r[:C_out, :] + b1_ref[...], 0.0)         # relu1
    # TODO(synk): dropout1 / dropout2 are identity in eval mode; train-mode dropout not implemented.
    if has_downsample:
        res = r[C_out:, :] + bd_ref[...]                      # fused 1x1 conv residual
    else:
        res = cur                                             # identity residual (C_in == C_out)

    # ---- conv2 (causal, dilated) over h1 with carried h1 halo ----
    h1w = jnp.concatenate([h1h_ref[...], h1], axis=1)         # (C_out, padding+TL)
    h1h_ref[...] = h1w[:, TL:TL + padding]

    a2 = jnp.concatenate(
        [h1w[:, k * dilation:k * dilation + TL] for k in range(K)],
        axis=0).astype(mxu_dtype)                             # (K*C_out, TL)
    h2 = jnp.maximum(
        jnp.dot(w2_ref[...], a2, preferred_element_type=jnp.float32) + b2_ref[...],
        0.0)                                                  # relu2

    o_ref[0] = jnp.maximum(h2 + res, 0.0).astype(o_ref.dtype)  # final relu


def _pick_time_tile(L):
    if L <= 512:
        return L
    for tl in (512, 384, 256, 128):
        if L % tl == 0:
            return tl
    return L  # TODO(synk): remainder time-tiles not handled; fall back to whole-L blocks.


def temporal_block_forward(x_ncl, params, *, kernel_size, dilation, padding,
                           compute_dtype=jnp.bfloat16, time_tile=None):
    """x_ncl: (B, C_in, L) float32, PyTorch NCL layout.  Returns (B, C_out, L) float32."""
    w1, b1, w2, b2, wd, bd = params
    B, C_in, L = x_ncl.shape
    C_out = w1.shape[0]
    K = kernel_size
    has_downsample = wd is not None

    # TCN uses stride=1 and padding=(K-1)*dilation (causal conv + chomp).
    assert padding == (K - 1) * dilation and padding >= 1

    TL = _pick_time_tile(L) if time_tile is None else time_tile
    assert L % TL == 0
    num_t = L // TL

    # Fold the K taps into a single contraction axis: W[c, k*C_in + ci] = w[c, ci, k].
    w1f = jnp.transpose(w1, (0, 2, 1)).reshape(C_out, K * C_in)
    w2f = jnp.transpose(w2, (0, 2, 1)).reshape(C_out, K * C_out)
    if has_downsample:
        # Fuse the 1x1 downsample into the conv1 matmul: the residual reads the
        # current-time tap, which is tap K-1 of the folded conv1 operand.
        wres = jnp.zeros((C_out, K * C_in), jnp.float32)
        wres = wres.at[:, (K - 1) * C_in:].set(wd[:, :, 0])
        wc = jnp.concatenate([w1f, wres], axis=0)             # (2*C_out, K*C_in)
        bd_col = bd.reshape(C_out, 1).astype(jnp.float32)
    else:
        wc = w1f                                              # (C_out, K*C_in)
        bd_col = jnp.zeros((C_out, 1), jnp.float32)

    wc = wc.astype(compute_dtype)
    w2f = w2f.astype(compute_dtype)
    x_k = x_ncl.astype(compute_dtype)                         # halves HBM bytes when bf16
    b1c = b1.reshape(C_out, 1).astype(jnp.float32)
    b2c = b2.reshape(C_out, 1).astype(jnp.float32)
    W_rows = wc.shape[0]

    kernel = functools.partial(_temporal_block_kernel, K, dilation, padding,
                               has_downsample)

    out = pl.pallas_call(
        kernel,
        out_shape=jax.ShapeDtypeStruct((B, C_out, L), jnp.float32),
        grid_spec=pltpu.PrefetchScalarGridSpec(
            num_scalar_prefetch=0,
            grid=(B, num_t),
            in_specs=[
                pl.BlockSpec((1, C_in, TL), lambda b, t: (b, 0, t)),
                pl.BlockSpec((W_rows, K * C_in), lambda b, t: (0, 0)),
                pl.BlockSpec((C_out, K * C_out), lambda b, t: (0, 0)),
                pl.BlockSpec((C_out, 1), lambda b, t: (0, 0)),
                pl.BlockSpec((C_out, 1), lambda b, t: (0, 0)),
                pl.BlockSpec((C_out, 1), lambda b, t: (0, 0)),
            ],
            out_specs=pl.BlockSpec((1, C_out, TL), lambda b, t: (b, 0, t)),
            scratch_shapes=[
                pltpu.VMEM((C_in, padding), jnp.float32),   # carried x halo
                pltpu.VMEM((C_out, padding), jnp.float32),  # carried h1 halo
            ],
        ),
        compiler_params=pltpu.CompilerParams(
            # batch axis parallel (megacore), time axis sequential (halo carry)
            dimension_semantics=("parallel", "arbitrary"),
            vmem_limit_bytes=32 * 1024 * 1024,
        ),
    )(x_k, wc, w2f, b1c, b2c, bd_col)

    return out


def make_params(key, n_inputs, n_outputs, kernel_size):
    """Deterministic synthetic parameters (weight_norm applied to conv1/conv2)."""
    ks = jax.random.split(key, 8)

    def weight_norm(v, g):
        # torch weight_norm default dim=0: per-output-channel L2 norm over (C_in, K)
        norm = jnp.sqrt(jnp.sum(v * v, axis=(1, 2), keepdims=True))
        return g[:, None, None] * v / norm

    v1 = 0.05 * jax.random.normal(ks[0], (n_outputs, n_inputs, kernel_size), jnp.float32)
    g1 = jax.random.uniform(ks[1], (n_outputs,), jnp.float32, 0.5, 1.5)
    w1 = weight_norm(v1, g1)
    b1 = 0.01 * jax.random.normal(ks[2], (n_outputs,), jnp.float32)

    v2 = 0.05 * jax.random.normal(ks[3], (n_outputs, n_outputs, kernel_size), jnp.float32)
    g2 = jax.random.uniform(ks[4], (n_outputs,), jnp.float32, 0.5, 1.5)
    w2 = weight_norm(v2, g2)
    b2 = 0.01 * jax.random.normal(ks[5], (n_outputs,), jnp.float32)

    if n_inputs != n_outputs:
        wd = 0.01 * jax.random.normal(ks[6], (n_outputs, n_inputs, 1), jnp.float32)
        bd = 0.01 * jax.random.normal(ks[7], (n_outputs,), jnp.float32)
    else:
        wd, bd = None, None   # identity residual, no 1x1 conv

    return (w1, b1, w2, b2, wd, bd)


def reference_forward(x, params, *, dilation, padding):
    """Pure-JAX reference mirroring the PyTorch forward (eval mode)."""
    w1, b1, w2, b2, wd, bd = params
    L = x.shape[2]

    def conv1d(h, w, b, dil, pad):
        y = jax.lax.conv_general_dilated(
            h, w, window_strides=(1,), padding=[(pad, pad)],
            rhs_dilation=(dil,), dimension_numbers=('NCH', 'OIH', 'NCH'))
        return y + b[None, :, None]

    out = jnp.maximum(conv1d(x, w1, b1, dilation, padding)[:, :, :L], 0.0)
    out = jnp.maximum(conv1d(out, w2, b2, dilation, padding)[:, :, :L], 0.0)
    res = x if wd is None else conv1d(x, wd, bd, 1, 0)
    return jnp.maximum(out + res, 0.0)


if __name__ == "__main__":
    B, KSIZE, DIL = 2, 3, 2
    PAD = (KSIZE - 1) * DIL

    # (C_in, C_out, L, time_tile, compute_dtype, tol)
    configs = [
        (4, 8, 16, None, jnp.float32, 1e-4),     # downsample-fused path, exact f32
        (8, 8, 16, None, jnp.float32, 1e-4),     # identity residual path, exact f32
        (4, 8, 256, 128, jnp.float32, 1e-4),     # multi-tile: halo carried across time tiles
        (4, 8, 256, 128, jnp.bfloat16, 7.5e-2),  # bf16 MXU path (f32 accumulation)
    ]

    key = jax.random.PRNGKey(0)
    for idx, (c_in, c_out, L, tl, cdt, tol) in enumerate(configs):
        kx, kp = jax.random.split(jax.random.fold_in(key, idx))
        x = jax.random.normal(kx, (B, c_in, L), jnp.float32)   # PyTorch NCL input
        params = make_params(kp, c_in, c_out, KSIZE)

        out = temporal_block_forward(x, params, kernel_size=KSIZE, dilation=DIL,
                                     padding=PAD, compute_dtype=cdt, time_tile=tl)
        out = jax.block_until_ready(out)

        ref = jax.block_until_ready(
            reference_forward(x, params, dilation=DIL, padding=PAD))

        assert out.shape == (B, c_out, L), out.shape
        assert jnp.allclose(out, ref, atol=tol, rtol=tol), \
            (idx, float(jnp.max(jnp.abs(out - ref))))

    print("KERNEL_OK")
</pallas_src>

<mosaic_0001>
module attributes {stable_mosaic.version = 11 : i64} {
  func.func @_temporal_block_kernel(%arg0: i32, %arg1: i32, %arg2: memref<1x4x16xf32, #tpu.memory_space<vmem>>, %arg3: memref<16x12xf32, #tpu.memory_space<vmem>>, %arg4: memref<8x24xf32, #tpu.memory_space<vmem>>, %arg5: memref<8x1xf32, #tpu.memory_space<vmem>>, %arg6: memref<8x1xf32, #tpu.memory_space<vmem>>, %arg7: memref<8x1xf32, #tpu.memory_space<vmem>>, %arg8: memref<1x8x16xf32, #tpu.memory_space<vmem>>, %arg9: memref<4x4xf32, #tpu.memory_space<vmem>>, %arg10: memref<8x4xf32, #tpu.memory_space<vmem>>) attributes {dimension_semantics = [#tpu.dimension_semantics<parallel>, #tpu.dimension_semantics<arbitrary>], iteration_bounds = array<i64: 2, 1>, scalar_prefetch = 0 : i64, scratch_operands = 2 : i64, tpu.core_type = #tpu.core_type<tc>, window_params = [{transform_indices = @transform_0, window_bounds = array<i64: 1, 4, 16>}, {pipeline_mode = #tpu.pipeline_mode<synchronous>, transform_indices = @transform_1, window_bounds = array<i64: 16, 12>}, {pipeline_mode = #tpu.pipeline_mode<synchronous>, transform_indices = @transform_2, window_bounds = array<i64: 8, 24>}, {pipeline_mode = #tpu.pipeline_mode<synchronous>, transform_indices = @transform_3, window_bounds = array<i64: 8, 1>}, {pipeline_mode = #tpu.pipeline_mode<synchronous>, transform_indices = @transform_4, window_bounds = array<i64: 8, 1>}, {pipeline_mode = #tpu.pipeline_mode<synchronous>, transform_indices = @transform_5, window_bounds = array<i64: 8, 1>}, {transform_indices = @transform_6, window_bounds = array<i64: 1, 8, 16>}]} {
    %c0_i32 = arith.constant 0 : i32
    %0 = arith.cmpi eq, %arg1, %c0_i32 : i32
    %1 = arith.extui %0 : i1 to i32
    %c0_i32_0 = arith.constant 0 : i32
    %2 = arith.cmpi ne, %1, %c0_i32_0 : i32
    scf.if %2 {
      %cst_28 = arith.constant 0.000000e+00 : f32
      %46 = vector.broadcast %cst_28 : f32 to vector<4x4xf32>
      %c0_29 = arith.constant 0 : index
      %c0_30 = arith.constant 0 : index
      %47 = vector.load %arg9[%c0_29, %c0_30] : memref<4x4xf32, #tpu.memory_space<vmem>>, vector<4x4xf32>
      tpu.vector_store %arg9[%c0_29, %c0_30], %46 {strides = array<i32>} : memref<4x4xf32, #tpu.memory_space<vmem>>, vector<4x4xf32>,
      %cst_31 = arith.constant 0.000000e+00 : f32
      %48 = vector.broadcast %cst_31 : f32 to vector<8x4xf32>
      %c0_32 = arith.constant 0 : index
      %c0_33 = arith.constant 0 : index
      %49 = vector.load %arg10[%c0_32, %c0_33] : memref<8x4xf32, #tpu.memory_space<vmem>>, vector<8x4xf32>
      tpu.vector_store %arg10[%c0_32, %c0_33], %48 {strides = array<i32>} : memref<8x4xf32, #tpu.memory_space<vmem>>, vector<8x4xf32>,
    } else {
    }
    %c0 = arith.constant 0 : index
    %c0_1 = arith.constant 0 : index
    %c0_2 = arith.constant 0 : index
    %3 = vector.load %arg2[%c0, %c0_1, %c0_2] : memref<1x4x16xf32, #tpu.memory_space<vmem>>, vector<1x4x16xf32>
    %4 = vector.shape_cast %3 : vector<1x4x16xf32> to vector<4x16xf32>
    %c0_3 = arith.constant 0 : index
    %c0_4 = arith.constant 0 : index
    %5 = vector.load %arg9[%c0_3, %c0_4] : memref<4x4xf32, #tpu.memory_space<vmem>>, vector<4x4xf32>
    %6 = tpu.concatenate %5, %4 in 1 : vector<4x4xf32>, vector<4x16xf32> -> vector<4x20xf32>
    %7 = vector.extract_strided_slice %6 {offsets = [0, 16], sizes = [4, 4], strides = [1, 1]} : vector<4x20xf32> to vector<4x4xf32>
    %c0_5 = arith.constant 0 : index
    %c0_6 = arith.constant 0 : index
    %8 = vector.load %arg9[%c0_5, %c0_6] : memref<4x4xf32, #tpu.memory_space<vmem>>, vector<4x4xf32>
    tpu.vector_store %arg9[%c0_5, %c0_6], %7 {strides = array<i32>} : memref<4x4xf32, #tpu.memory_space<vmem>>, vector<4x4xf32>,
    %9 = vector.extract_strided_slice %6 {offsets = [0, 0], sizes = [4, 16], strides = [1, 1]} : vector<4x20xf32> to vector<4x16xf32>
    %10 = vector.extract_strided_slice %6 {offsets = [0, 2], sizes = [4, 16], strides = [1, 1]} : vector<4x20xf32> to vector<4x16xf32>
    %11 = vector.extract_strided_slice %6 {offsets = [0, 4], sizes = [4, 16], strides = [1, 1]} : vector<4x20xf32> to vector<4x16xf32>
    %12 = tpu.concatenate %9, %10, %11 in 0 : vector<4x16xf32>, vector<4x16xf32>, vector<4x16xf32> -> vector<12x16xf32>
    %c0_7 = arith.constant 0 : index
    %c0_8 = arith.constant 0 : index
    %13 = vector.load %arg3[%c0_7, %c0_8] : memref<16x12xf32, #tpu.memory_space<vmem>>, vector<16x12xf32>
    %cst = arith.constant dense<0.000000e+00> : vector<16x16xf32>
    %14 = tpu.matmul %13, %12, %cst {dimension_numbers = #tpu.dot_dimension_numbers<[1], [0], [0], [1], [0, 0, 1, 1], [], []>} : vector<16x12xf32>, vector<12x16xf32>, vector<16x16xf32> -> vector<16x16xf32>
    %15 = vector.extract_strided_slice %14 {offsets = [0, 0], sizes = [8, 16], strides = [1, 1]} : vector<16x16xf32> to vector<8x16xf32>
    %c0_9 = arith.constant 0 : index
    %c0_10 = arith.constant 0 : index
    %16 = vector.load %arg5[%c0_9, %c0_10] : memref<8x1xf32, #tpu.memory_space<vmem>>, vector<8x1xf32>
    %17 = vector.broadcast %16 : vector<8x1xf32> to vector<8x16xf32>
    %18 = arith.addf %15, %17 : vector<8x16xf32>
    %cst_11 = arith.constant 0.000000e+00 : f32
    %19 = vector.broadcast %cst_11 : f32 to vector<8x16xf32>
    %20 = arith.maximumf %18, %19 : vector<8x16xf32>
    %21 = vector.extract_strided_slice %14 {offsets = [8, 0], sizes = [8, 16], strides = [1, 1]} : vector<16x16xf32> to vector<8x16xf32>
    %c0_12 = arith.constant 0 : index
    %c0_13 = arith.constant 0 : index
    %22 = vector.load %arg7[%c0_12, %c0_13] : memref<8x1xf32, #tpu.memory_space<vmem>>, vector<8x1xf32>
    %23 = vector.broadcast %22 : vector<8x1xf32> to vector<8x16xf32>
    %24 = arith.addf %21, %23 : vector<8x16xf32>
    %c0_14 = arith.constant 0 : index
    %c0_15 = arith.constant 0 : index
    %25 = vector.load %arg10[%c0_14, %c0_15] : memref<8x4xf32, #tpu.memory_space<vmem>>, vector<8x4xf32>
    %26 = tpu.concatenate %25, %20 in 1 : vector<8x4xf32>, vector<8x16xf32> -> vector<8x20xf32>
    %27 = vector.extract_strided_slice %26 {offsets = [0, 16], sizes = [8, 4], strides = [1, 1]} : vector<8x20xf32> to vector<8x4xf32>
    %c0_16 = arith.constant 0 : index
    %c0_17 = arith.constant 0 : index
    %28 = vector.load %arg10[%c0_16, %c0_17] : memref<8x4xf32, #tpu.memory_space<vmem>>, vector<8x4xf32>
    tpu.vector_store %arg10[%c0_16, %c0_17], %27 {strides = array<i32>} : memref<8x4xf32, #tpu.memory_space<vmem>>, vector<8x4xf32>,
    %29 = vector.extract_strided_slice %26 {offsets = [0, 0], sizes = [8, 16], strides = [1, 1]} : vector<8x20xf32> to vector<8x16xf32>
    %30 = vector.extract_strided_slice %26 {offsets = [0, 2], sizes = [8, 16], strides = [1, 1]} : vector<8x20xf32> to vector<8x16xf32>
    %31 = vector.extract_strided_slice %26 {offsets = [0, 4], sizes = [8, 16], strides = [1, 1]} : vector<8x20xf32> to vector<8x16xf32>
    %32 = tpu.concatenate %29, %30, %31 in 0 : vector<8x16xf32>, vector<8x16xf32>, vector<8x16xf32> -> vector<24x16xf32>
    %c0_18 = arith.constant 0 : index
    %c0_19 = arith.constant 0 : index
    %33 = vector.load %arg4[%c0_18, %c0_19] : memref<8x24xf32, #tpu.memory_space<vmem>>, vector<8x24xf32>
    %cst_20 = arith.constant dense<0.000000e+00> : vector<8x16xf32>
    %34 = tpu.matmul %33, %32, %cst_20 {dimension_numbers = #tpu.dot_dimension_numbers<[1], [0], [0], [1], [0, 0, 1, 1], [], []>} : vector<8x24xf32>, vector<24x16xf32>, vector<8x16xf32> -> vector<8x16xf32>
    %c0_21 = arith.constant 0 : index
    %c0_22 = arith.constant 0 : index
    %35 = vector.load %arg6[%c0_21, %c0_22] : memref<8x1xf32, #tpu.memory_space<vmem>>, vector<8x1xf32>
    %36 = vector.broadcast %35 : vector<8x1xf32> to vector<8x16xf32>
    %37 = arith.addf %34, %36 : vector<8x16xf32>
    %cst_23 = arith.constant 0.000000e+00 : f32
    %38 = vector.broadcast %cst_23 : f32 to vector<8x16xf32>
    %39 = arith.maximumf %37, %38 : vector<8x16xf32>
    %40 = arith.addf %39, %24 : vector<8x16xf32>
    %cst_24 = arith.constant 0.000000e+00 : f32
    %41 = vector.broadcast %cst_24 : f32 to vector<8x16xf32>
    %42 = arith.maximumf %40, %41 : vector<8x16xf32>
    %c0_25 = arith.constant 0 : index
    %c0_26 = arith.constant 0 : index
    %c0_27 = arith.constant 0 : index
    %43 = vector.load %arg8[%c0_25, %c0_26, %c0_27] : memref<1x8x16xf32, #tpu.memory_space<vmem>>, vector<1x8x16xf32>
    %44 = vector.shape_cast %43 : vector<1x8x16xf32> to vector<8x16xf32>
    %45 = vector.shape_cast %42 : vector<8x16xf32> to vector<1x8x16xf32>
    tpu.vector_store %arg8[%c0_25, %c0_26, %c0_27], %45 {strides = array<i32>} : memref<1x8x16xf32, #tpu.memory_space<vmem>>, vector<1x8x16xf32>,
    return
  }
  func.func @transform_0(%arg0: i32, %arg1: i32) -> (i32, i32, i32) {
    %c0_i32 = arith.constant 0 : i32
    %c0_i32_0 = arith.constant 0 : i32
    return %arg0, %c0_i32, %arg1 : i32, i32, i32
  }
  func.func @transform_1(%arg0: i32, %arg1: i32) -> (i32, i32) {
    %c0_i32 = arith.constant 0 : i32
    %c0_i32_0 = arith.constant 0 : i32
    %c0_i32_1 = arith.constant 0 : i32
    return %c0_i32, %c0_i32_0 : i32, i32
  }
  func.func @transform_2(%arg0: i32, %arg1: i32) -> (i32, i32) {
    %c0_i32 = arith.constant 0 : i32
    %c0_i32_0 = arith.constant 0 : i32
    %c0_i32_1 = arith.constant 0 : i32
    return %c0_i32, %c0_i32_0 : i32, i32
  }
  func.func @transform_3(%arg0: i32, %arg1: i32) -> (i32, i32) {
    %c0_i32 = arith.constant 0 : i32
    %c0_i32_0 = arith.constant 0 : i32
    %c0_i32_1 = arith.constant 0 : i32
    return %c0_i32, %c0_i32_0 : i32, i32
  }
  func.func @transform_4(%arg0: i32, %arg1: i32) -> (i32, i32) {
    %c0_i32 = arith.constant 0 : i32
    %c0_i32_0 = arith.constant 0 : i32
    %c0_i32_1 = arith.constant 0 : i32
    return %c0_i32, %c0_i32_0 : i32, i32
  }
  func.func @transform_5(%arg0: i32, %arg1: i32) -> (i32, i32) {
    %c0_i32 = arith.constant 0 : i32
    %c0_i32_0 = arith.constant 0 : i32
    %c0_i32_1 = arith.constant 0 : i32
    return %c0_i32, %c0_i32_0 : i32, i32
  }
  func.func @transform_6(%arg0: i32, %arg1: i32) -> (i32, i32, i32) {
    %c0_i32 = arith.constant 0 : i32
    %c0_i32_0 = arith.constant 0 : i32
    return %arg0, %c0_i32, %arg1 : i32, i32, i32
  }
}

</mosaic_0001>

<llo_original>
// kernel: tpu_custom_call.1
$region0: #{tpu_custom_call.1}
  #allocation0 [shape = 'u32[]', space=smem, size = 0x4, offset = 0x4, fixed_abs, tag = 'smem constant byte address 0x4 - core index']
  #allocation1 [shape = 'u32[144,128]{1,0:T(1,128)}', space=vmem, size = 0x12000, scoped, tag = 'internal scratch']
  #allocation2 [shape = 'f32[4,4]{1,0:T(4,128)}', space=vmem, size = 0x800, scoped, tag = 'scratch operand']
  #allocation3 [shape = 'f32[8,4]{1,0:T(8,128)}', space=vmem, size = 0x1000, scoped, tag = 'scratch operand']
  %s0 = inlined_call_operand.vmem [shape: f32[2,4,16], index: 0, kind: input, shape index: {}]
  %s1 = inlined_call_operand.vmem [shape: f32[16,12], index: 1, kind: input, shape index: {}]
  %s2 = inlined_call_operand.vmem [shape: f32[8,24], index: 2, kind: input, shape index: {}]
  %s3 = inlined_call_operand.vmem [shape: f32[8,1], index: 3, kind: input, shape index: {}]
  %s4 = inlined_call_operand.vmem [shape: f32[8,1], index: 4, kind: input, shape index: {}]
  %s5 = inlined_call_operand.vmem [shape: f32[8,1], index: 5, kind: input, shape index: {}]
  %s6 = inlined_call_operand.hbm [shape: f32[2,8,16], index: 6, kind: output, shape index: {}]
  %s7 = sld [smem:[#allocation0]]
  $region61: #{tpu_custom_call.1} parent=0
    _
  %s9 = ssub.s32 1, %s7
  %s10 = scalar_select 0, %s9, %s7
  $region1: #{tpu_custom_call.1} parent=0
    #allocation4 [shape = 'u8[8192]{0}', space=vmem, size = 0x2000, scoped, tag = 'output window, operand 0']
    #allocation5 [shape = 's32[2]{0}', space=sflag, size = 0x8, scoped, tag = 'scoped memory for tpu_custom_call.1']
    %11 = vsyncpa [#allocation5], 0
    %s12 = scalar_lea.sflag [#allocation5], 1
    %13 = vsyncpa %s12, 0
    loop: start=0, step=1, limit=4
    $region2: #{tpu_custom_call.1} parent=1 // loop_pre_header
      _
    $region3: #{tpu_custom_call.1} parent=1 // loop_header
      %s15 = sphi 0, %s19
      %p16 = scmp.ge.s32.totalorder %s15, 4
      %s22 = sphi 0, %s34
      %s23 = sphi 0, %s30
      %s24 = sphi 0, %s22
      %s25 = sphi 0, %s23
      %s26 = sphi 0, %s24
      %s27 = sphi 0, %s25
      %s39 = sphi 0, %s41
      %s42 = sphi 0, %s39
      %s43 = sphi 0, %s42
      %s59 = sphi 0, %s43
      %s63 = sphi 0, %s63
      %s65 = sphi 0, %s63
      %s66 = sphi 0, %s65
      %s80 = sphi 0, %s66
      %s84 = sphi 0, %s84
      %s86 = sphi 0, %s84
      %s87 = sphi 0, %s86
      %s101 = sphi 0, %s87
      %s105 = sphi 0, %s105
      %s107 = sphi 0, %s105
      %s108 = sphi 0, %s107
      %s122 = sphi 0, %s108
      %s126 = sphi 0, %s126
      %s128 = sphi 0, %s126
      %s129 = sphi 0, %s128
      %s143 = sphi 0, %s129
      %s147 = sphi 0, %s147
      %s149 = sphi 0, %s147
      %s150 = sphi 0, %s149
      %s164 = sphi 0, %s150
      %s172 = sphi 0, %s174
      %s175 = sphi 0, %s172
      %s176 = sphi 0, %s175
      %s192 = sphi 0, %s176
    $region4: #{tpu_custom_call.1} parent=1 // loop_header_branch
      %18 = sbr.rel (%p16) target = $region8
    $region5: #{tpu_custom_call.1} parent=1 // loop_body
      %s20 = ssub.s32 %s15, 1
      %s21 = ssub.s32 %s15, 2
      %s28 = sadd.s32 1, %s23
      %p29 = scmp.ge.s32.totalorder %s28, 1
      %s30 = scalar_select %p29, 0, %s28
      %s31 = sadd.s32 1, %s22
      %s32 = scalar_select %p29, %s31, %s22
      %p33 = scmp.ge.s32.totalorder %s32, 2
      %s34 = scalar_select %p33, 0, %s32
      %s35 = ssub.s32 %s22, %s34
      %s36 = ssub.s32 %s23, %s30
      %s37 = sor.u32 %s35, %s36
      %p38 = scmp.eq.s32.totalorder %s37, 0
      %s40 = sadd.s32 %s39, 1
      %s41 = scalar_select %p38, %s39, %s40
      %p44 = pneg %p38
      %p45 = scmp.eq.s32.totalorder %s15, 1
      %p46 = por %p44, %p45
      %p47 = scmp.ne.s32.totalorder %s39, %s42
      %p48 = scmp.eq.s32.totalorder %s15, 0
      %p49 = por %p47, %p48
      %p50 = scmp.ne.s32.totalorder %s39, %s42
      %p51 = scmp.eq.s32.totalorder %s20, 1
      %p52 = por %p50, %p51
      %p53 = scmp.ne.s32.totalorder %s42, %s43
      %p54 = scmp.eq.s32.totalorder %s20, 0
      %p55 = por %p53, %p54
      %p56 = scmp.ne.s32.totalorder %s42, %s43
      %p57 = scmp.eq.s32.totalorder %s21, 1
      %p58 = por %p56, %p57
      %p60 = scmp.ne.s32.totalorder %s43, %s59
      %p61 = scmp.eq.s32.totalorder %s21, 0
      %p62 = por %p60, %p61
      %s64 = sadd.s32 %s63, 1
      %p67 = scmp.eq.s32.totalorder %s15, 1
      %p68 = scmp.ne.s32.totalorder %s63, %s65
      %p69 = scmp.eq.s32.totalorder %s15, 0
      %p70 = por %p68, %p69
      %p71 = scmp.ne.s32.totalorder %s63, %s65
      %p72 = scmp.eq.s32.totalorder %s20, 1
      %p73 = por %p71, %p72
      %p74 = scmp.ne.s32.totalorder %s65, %s66
      %p75 = scmp.eq.s32.totalorder %s20, 0
      %p76 = por %p74, %p75
      %p77 = scmp.ne.s32.totalorder %s65, %s66
      %p78 = scmp.eq.s32.totalorder %s21, 1
      %p79 = por %p77, %p78
      %p81 = scmp.ne.s32.totalorder %s66, %s80
      %p82 = scmp.eq.s32.totalorder %s21, 0
      %p83 = por %p81, %p82
      %s85 = sadd.s32 %s84, 1
      %p88 = scmp.eq.s32.totalorder %s15, 1
      %p89 = scmp.ne.s32.totalorder %s84, %s86
      %p90 = scmp.eq.s32.totalorder %s15, 0
      %p91 = por %p89, %p90
      %p92 = scmp.ne.s32.totalorder %s84, %s86
      %p93 = scmp.eq.s32.totalorder %s20, 1
      %p94 = por %p92, %p93
      %p95 = scmp.ne.s32.totalorder %s86, %s87
      %p96 = scmp.eq.s32.totalorder %s20, 0
      %p97 = por %p95, %p96
      %p98 = scmp.ne.s32.totalorder %s86, %s87
      %p99 = scmp.eq.s32.totalorder %s21, 1
      %p100 = por %p98, %p99
      %p102 = scmp.ne.s32.totalorder %s87, %s101
      %p103 = scmp.eq.s32.totalorder %s21, 0
      %p104 = por %p102, %p103
      %s106 = sadd.s32 %s105, 1
      %p109 = scmp.eq.s32.totalorder %s15, 1
      %p110 = scmp.ne.s32.totalorder %s105, %s107
      %p111 = scmp.eq.s32.totalorder %s15, 0
      %p112 = por %p110, %p111
      %p113 = scmp.ne.s32.totalorder %s105, %s107
      %p114 = scmp.eq.s32.totalorder %s20, 1
      %p115 = por %p113, %p114
      %p116 = scmp.ne.s32.totalorder %s107, %s108
      %p117 = scmp.eq.s32.totalorder %s20, 0
      %p118 = por %p116, %p117
      %p119 = scmp.ne.s32.totalorder %s107, %s108
      %p120 = scmp.eq.s32.totalorder %s21, 1
      %p121 = por %p119, %p120
      %p123 = scmp.ne.s32.totalorder %s108, %s122
      %p124 = scmp.eq.s32.totalorder %s21, 0
      %p125 = por %p123, %p124
      %s127 = sadd.s32 %s126, 1
      %p130 = scmp.eq.s32.totalorder %s15, 1
      %p131 = scmp.ne.s32.totalorder %s126, %s128
      %p132 = scmp.eq.s32.totalorder %s15, 0
      %p133 = por %p131, %p132
      %p134 = scmp.ne.s32.totalorder %s126, %s128
      %p135 = scmp.eq.s32.totalorder %s20, 1
      %p136 = por %p134, %p135
      %p137 = scmp.ne.s32.totalorder %s128, %s129
      %p138 = scmp.eq.s32.totalorder %s20, 0
      %p139 = por %p137, %p138
      %p140 = scmp.ne.s32.totalorder %s128, %s129
      %p141 = scmp.eq.s32.totalorder %s21, 1
      %p142 = por %p140, %p141
      %p144 = scmp.ne.s32.totalorder %s129, %s143
      %p145 = scmp.eq.s32.totalorder %s21, 0
      %p146 = por %p144, %p145
      %s148 = sadd.s32 %s147, 1
      %p151 = scmp.eq.s32.totalorder %s15, 1
      %p152 = scmp.ne.s32.totalorder %s147, %s149
      %p153 = scmp.eq.s32.totalorder %s15, 0
      %p154 = por %p152, %p153
      %p155 = scmp.ne.s32.totalorder %s147, %s149
      %p156 = scmp.eq.s32.totalorder %s20, 1
      %p157 = por %p155, %p156
      %p158 = scmp.ne.s32.totalorder %s149, %s150
      %p159 = scmp.eq.s32.totalorder %s20, 0
      %p160 = por %p158, %p159
      %p161 = scmp.ne.s32.totalorder %s149, %s150
      %p162 = scmp.eq.s32.totalorder %s21, 1
      %p163 = por %p161, %p162
      %p165 = scmp.ne.s32.totalorder %s150, %s164
      %p166 = scmp.eq.s32.totalorder %s21, 0
      %p167 = por %p165, %p166
      %s168 = ssub.s32 %s22, %s34
      %s169 = ssub.s32 %s23, %s30
      %s170 = sor.u32 %s168, %s169
      %p171 = scmp.eq.s32.totalorder %s170, 0
      %s173 = sadd.s32 %s172, 1
      %s174 = scalar_select %p171, %s172, %s173
      %p177 = pneg %p171
      %p178 = scmp.eq.s32.totalorder %s15, 1
      %p179 = por %p177, %p178
      %p180 = scmp.ne.s32.totalorder %s172, %s175
      %p181 = scmp.eq.s32.totalorder %s15, 0
      %p182 = por %p180, %p181
      %p183 = scmp.ne.s32.totalorder %s172, %s175
      %p184 = scmp.eq.s32.totalorder %s20, 1
      %p185 = por %p183, %p184
      %p186 = scmp.ne.s32.totalorder %s175, %s176
      %p187 = scmp.eq.s32.totalorder %s20, 0
      %p188 = por %p186, %p187
      %p189 = scmp.ne.s32.totalorder %s175, %s176
      %p190 = scmp.eq.s32.totalorder %s21, 1
      %p191 = por %p189, %p190
      %p193 = scmp.ne.s32.totalorder %s176, %s192
      %p194 = scmp.eq.s32.totalorder %s21, 0
      %p195 = por %p193, %p194
      %p196 = scmp.le.s32.totalorder 1, %s15
      %p197 = scmp.lt.s32.totalorder %s15, 3
      %p198 = pnand %p196, %p197
      %p199 = pneg %p198
      // Predicated region
      $region9: #{tpu_custom_call.1} parent=5 // pred_check
        _
      $region10: #{tpu_custom_call.1} parent=5 // pred_check_branch
        %201 = sbr.rel (%p198) target = $region12
      $region11: #{tpu_custom_call.1} parent=5 // pred_region
        %s202 = ssub.s32 %s15, 1
        // Predicated region
        $region13: #{tpu_custom_call.1} parent=11 // pred_check
          %p203 = pneg %p76
        $region14: #{tpu_custom_call.1} parent=11 // pred_check_branch
          %205 = sbr.rel (%p203) target = $region16
        $region15: #{tpu_custom_call.1} parent=11 // pred_region
          _
        $region16: #{tpu_custom_call.1} parent=11 // pred_fallthru
          _
        // Predicated region
        $region17: #{tpu_custom_call.1} parent=11 // pred_check
          %p206 = pneg %p97
        $region18: #{tpu_custom_call.1} parent=11 // pred_check_branch
          %208 = sbr.rel (%p206) target = $region20
        $region19: #{tpu_custom_call.1} parent=11 // pred_region
          _
        $region20: #{tpu_custom_call.1} parent=11 // pred_fallthru
          _
        // Predicated region
        $region21: #{tpu_custom_call.1} parent=11 // pred_check
          %p209 = pneg %p118
        $region22: #{tpu_custom_call.1} parent=11 // pred_check_branch
          %211 = sbr.rel (%p209) target = $region24
        $region23: #{tpu_custom_call.1} parent=11 // pred_region
          _
        $region24: #{tpu_custom_call.1} parent=11 // pred_fallthru
          _
        // Predicated region
        $region25: #{tpu_custom_call.1} parent=11 // pred_check
          %p212 = pneg %p139
        $region26: #{tpu_custom_call.1} parent=11 // pred_check_branch
          %214 = sbr.rel (%p212) target = $region28
        $region27: #{tpu_custom_call.1} parent=11 // pred_region
          _
        $region28: #{tpu_custom_call.1} parent=11 // pred_fallthru
          _
        // Predicated region
        $region29: #{tpu_custom_call.1} parent=11 // pred_check
          %p215 = pneg %p160
        $region30: #{tpu_custom_call.1} parent=11 // pred_check_branch
          %217 = sbr.rel (%p215) target = $region32
        $region31: #{tpu_custom_call.1} parent=11 // pred_region
          _
        $region32: #{tpu_custom_call.1} parent=11 // pred_fallthru
          _
      $region12: #{tpu_custom_call.1} parent=5 // pred_fallthru
        _
      %p218 = scmp.lt.s32.totalorder %s15, 2
      // Predicated region
      $region33: #{tpu_custom_call.1} parent=5 // pred_check
        %p219 = pneg %p218
      $region34: #{tpu_custom_call.1} parent=5 // pred_check_branch
        %221 = sbr.rel (%p219) target = $region36
      $region35: #{tpu_custom_call.1} parent=5 // pred_region
        // Predicated region
        $region37: #{tpu_custom_call.1} parent=35 // pred_check
          %p222 = pneg %p49
        $region38: #{tpu_custom_call.1} parent=35 // pred_check_branch
          %224 = sbr.rel (%p222) target = $region40
        $region39: #{tpu_custom_call.1} parent=35 // pred_region
          %p225 = scmp.lt.s32.totalorder %s22, 1
          %s226 = scalar_select %p225, %s22, 1
          %p227 = scmp.lt.s32.totalorder %s23, 0
          %s228 = scalar_select %p227, %s23, 0
          %s229 = sadd.s32 %s228, %s226
          %s230 = smul.addr %s229, 4
          %s231 = scalar_lea.vmem %s0, %s230
        $region40: #{tpu_custom_call.1} parent=35 // pred_fallthru
          _
      $region36: #{tpu_custom_call.1} parent=5 // pred_fallthru
        _
      %p232 = scmp.le.s32.totalorder 1, %s15
      %p233 = scmp.lt.s32.totalorder %s15, 3
      %p234 = pnand %p232, %p233
      %p235 = pneg %p234
      // Predicated region
      $region41: #{tpu_custom_call.1} parent=5 // pred_check
        _
      $region42: #{tpu_custom_call.1} parent=5 // pred_check_branch
        %237 = sbr.rel (%p234) target = $region44
      $region43: #{tpu_custom_call.1} parent=5 // pred_region
        %s238 = ssub.s32 %s15, 1
        %p239 = scmp.lt.s32.totalorder %s24, 1
        %s240 = scalar_select %p239, %s24, 1
        %p241 = scmp.lt.s32.totalorder %s25, 0
        %s242 = scalar_select %p241, %s25, 0
        %s243 = sadd.s32 %s242, %s240
        %s244 = smul.addr %s243, 4
        %s245 = scalar_lea.vmem %s0, %s244
        %p246 = pneg %p55
        %p247 = pneg %p52
        %p248 = pneg %p76
        %p249 = pneg %p73
        %p250 = pneg %p97
        %p251 = pneg %p94
        %p252 = pneg %p118
        %p253 = pneg %p115
        %p254 = pneg %p139
        %p255 = pneg %p136
        %p256 = pneg %p160
        %p257 = pneg %p157
        %p258 = pneg %p188
        %p259 = pneg %p185
        %s260 = sand.u32 %s175, 1
        %s261 = scalar_lea.sflag [#allocation5], %s260
        %s262 = sand.u32 %s175, 1
        %s263 = smul.addr %s262, 8
        %s264 = scalar_lea.vmem [#allocation4], %s263
        %p265 = scmp.lt.s32.totalorder %s24, 1
        %s266 = scalar_select %p265, %s24, 1
        %p267 = scmp.lt.s32.totalorder %s25, 0
        %s268 = scalar_select %p267, %s25, 0
        %s269 = sadd.s32 %s268, %s266
        %s270 = smul.addr %s269, 4
        %s271 = scalar_lea.vmem %s0, %s270
        %p272 = scmp.eq.s32.totalorder %s25, 0
        // Predicated region
        $region45: #{tpu_custom_call.1} parent=43 // pred_check
          %p273 = pneg %p272
        $region46: #{tpu_custom_call.1} parent=43 // pred_check_branch
          %275 = sbr.rel (%p273) target = $region48
        $region47: #{tpu_custom_call.1} parent=43 // pred_region
          %vm276 = vcmask 27648
          %277 = vst.msk [vmem:[#allocation2] sm:$0xf] %vm276, 0.0
          %vm278 = vcmask 31744
          %279 = vst.msk [vmem:[#allocation3] sm:$0xff] %vm278, 0.0
        $region48: #{tpu_custom_call.1} parent=43 // pred_fallthru
          _
        %v280 = vld [vmem:[%s271] sm:$0xf]
        %v281 = vld [vmem:[#allocation2] sm:$0xf]
        %283 = vrot.lane.b32.xlu0 %v280, 4
        %v284 = vpop.permute.xlu0 %283
        %vm286 = vcmask 31744
        %v287 = vsel %vm286, %v281, %v284
        %289 = vrot.lane.b32.xlu0 %v287, 112
        %v290 = vpop.permute.xlu0 %289
        %vm292 = vcmask 27648
        %293 = vst.msk [vmem:[#allocation2] sm:$0xf] %vm292, %v290
        %v294 = vrot.slane %v287, 4
        %295 = vrot.lane.b32.xlu0 %v294, 126
        %v296 = vpop.permute.xlu0 %295
        %298 = vrot.lane.b32.xlu0 %v287, 124
        %v299 = vpop.permute.xlu0 %298
        %vm300 = vcmask 1043456
        %v301 = vsel %vm300, %v287, %v296
        %v302 = vld [vmem:[%s1] sm:$0xff]
        %v303 = vld [vmem:[%s1 + $0x8] sm:$0xff]
        %vm304 = vcmask 97280
        %v306 = vsel %vm304, %v302, 0
        %v309 = vsel %vm304, %v303, 0
        %v311 = vsel %vm300, %v299, 0
        %313 = vmatprep.subr.mxu0 0.0
        %314 = vmatpush1.msra.mxu0 %v301
        %315 = vmatprep.subr.mxu0 0.0
        %316 = vmatpush1.msra.mxu0 %v311
        %317 = vmatprep.subr.mxu0 0.0
        %318 = vmatpush1.msra.mxu0 0.0
        %319 = vmatprep.subr.mxu0 0.0
        %320 = vmatpush1.msra.mxu0 0.0
        %321 = vmatprep.subr.mxu0 0.0
        %322 = vmatpush1.msra.mxu0 0.0
        %323 = vmatprep.subr.mxu0 0.0
        %324 = vmatpush1.msra.mxu0 0.0
        %325 = vmatprep.subr.mxu0 0.0
        %326 = vmatpush1.msra.mxu0 0.0
        %327 = vmatprep.subr.mxu0 0.0
        %328 = vmatpush1.msra.mxu0 0.0
        %329 = vmatprep.subr.mxu0 0.0
        %330 = vmatpush1.msra.mxu0 0.0
        %331 = vmatprep.subr.mxu0 0.0
        %332 = vmatpush1.msra.mxu0 0.0
        %333 = vmatprep.subr.mxu0 0.0
        %334 = vmatpush1.msra.mxu0 0.0
        %335 = vmatprep.subr.mxu0 0.0
        %336 = vmatpush1.msra.mxu0 0.0
        %337 = vmatprep.subr.mxu0 0.0
        %338 = vmatpush1.msra.mxu0 0.0
        %339 = vmatprep.subr.mxu0 0.0
        %340 = vmatpush1.msra.mxu0 0.0
        %341 = vmatprep.subr.mxu0 0.0
        %342 = vmatpush1.msra.mxu0 0.0
        %343 = vmatprep.subr.mxu0 0.0
        %344 = vmatpush1.msra.mxu0 0.0
        %345 = vmatprep.subr.mxu0 0.0
        %346 = vmatpush1.msra.mxu0 0.0
        %347 = vmatprep.subr.mxu0 0.0
        %348 = vmatpush1.msra.mxu0 0.0
        %349 = vmatprep.subr.mxu0 0.0
        %350 = vmatpush1.msra.mxu0 0.0
        %351 = vmatprep.subr.mxu0 0.0
        %352 = vmatpush1.msra.mxu0 0.0
        %353 = vmatprep.subr.mxu0 0.0
        %354 = vmatpush1.msra.mxu0 0.0
        %355 = vmatprep.subr.mxu0 0.0
        %356 = vmatpush1.msra.mxu0 0.0
        %357 = vmatprep.subr.mxu0 0.0
        %358 = vmatpush1.msra.mxu0 0.0
        %359 = vmatprep.subr.mxu0 0.0
        %360 = vmatpush1.msra.mxu0 0.0
        %361 = vmatprep.subr.mxu0 0.0
        %362 = vmatpush1.msra.mxu0 0.0
        %363 = vmatprep.subr.mxu0 0.0
        %364 = vmatpush1.msra.mxu0 0.0
        %365 = vmatprep.subr.mxu0 0.0
        %366 = vmatpush1.msra.mxu0 0.0
        %367 = vmatprep.subr.mxu0 0.0
        %368 = vmatpush1.msra.mxu0 0.0
        %369 = vmatprep.subr.mxu0 0.0
        %370 = vmatpush1.msra.mxu0 0.0
        %371 = vmatprep.subr.mxu0 0.0
        %372 = vmatpush1.msra.mxu0 0.0
        %373 = vmatprep.subr.mxu0 0.0
        %374 = vmatpush1.msra.mxu0 0.0
        %375 = vmatprep.subr.mxu0 0.0
        %376 = vmatpush1.msra.mxu0 0.0
        %377 = vmatprep.mubr.f32.mxu0 0.0
        %378 = vmatmul.mubr.f32.gmra.mrb[0].mxu0 %v306
        %v379 = vpop.f32.mrb[0].mxu0
        %v380 = vadd.f32 0.0, %v379
        %v381 = vpop.f32.mrb[0].mxu0
        %382 = vmatprep.mubr.f32.mxu0 0.0
        %383 = vmatmul.mubr.f32.gmra.mrb[0].mxu0 %v309
        %v384 = vpop.f32.mrb[0].mxu0
        %v385 = vadd.f32 0.0, %v384
        %v386 = vpop.f32.mrb[0].mxu0
        %387 = vdwg.mxu0
        %v388 = vld [vmem:[%s3] sm:$0xff]
        %390 = vset.pattern.permute.xlu0 0
        %391 = vperm.xlu0 %390, %v388
        %v392 = vpop.permute.xlu0 %391
        %v394 = vadd.f32 %v380, %v392
        %v395 = vmax.f32 %v394, 0.0
        %v396 = vld [vmem:[%s5] sm:$0xff]
        %398 = vset.pattern.permute.xlu0 0
        %399 = vperm.xlu0 %398, %v396
        %v400 = vpop.permute.xlu0 %399
        %v402 = vadd.f32 %v385, %v400
        %v403 = vld [vmem:[#allocation3] sm:$0xff]
        %405 = vrot.lane.b32.xlu0 %v395, 4
        %v406 = vpop.permute.xlu0 %405
        %v408 = vsel %vm286, %v403, %v406
        %410 = vrot.lane.b32.xlu0 %v408, 112
        %v411 = vpop.permute.xlu0 %410
        %413 = vst.msk [vmem:[#allocation3] sm:$0xff] %vm286, %v411
        %414 = vrot.lane.b32.xlu0 %v408, 126
        %v415 = vpop.permute.xlu0 %414
        %417 = vrot.lane.b32.xlu0 %v408, 124
        %v418 = vpop.permute.xlu0 %417
        %v420 = vld [vmem:[%s2] sm:$0xff]
        %v421 = vld [vmem:[%s4] sm:$0xff]
        %423 = vset.pattern.permute.xlu0 0
        %424 = vperm.xlu0 %423, %v421
        %v425 = vpop.permute.xlu0 %424
        %vm427 = vcmask 195584
        %v429 = vsel %vm427, %v420, 0
        %431 = vmatprep.subr.mxu0 0.0
        %432 = vmatpush1.msra.mxu0 %v408
        %433 = vmatprep.subr.mxu0 0.0
        %434 = vmatpush1.msra.mxu0 %v415
        %435 = vmatprep.subr.mxu0 0.0
        %436 = vmatpush1.msra.mxu0 %v418
        %437 = vmatprep.subr.mxu0 0.0
        %438 = vmatpush1.msra.mxu0 0.0
        %439 = vmatprep.subr.mxu0 0.0
        %440 = vmatpush1.msra.mxu0 0.0
        %441 = vmatprep.subr.mxu0 0.0
        %442 = vmatpush1.msra.mxu0 0.0
        %443 = vmatprep.subr.mxu0 0.0
        %444 = vmatpush1.msra.mxu0 0.0
        %445 = vmatprep.subr.mxu0 0.0
        %446 = vmatpush1.msra.mxu0 0.0
        %447 = vmatprep.subr.mxu0 0.0
        %448 = vmatpush1.msra.mxu0 0.0
        %449 = vmatprep.subr.mxu0 0.0
        %450 = vmatpush1.msra.mxu0 0.0
        %451 = vmatprep.subr.mxu0 0.0
        %452 = vmatpush1.msra.mxu0 0.0
        %453 = vmatprep.subr.mxu0 0.0
        %454 = vmatpush1.msra.mxu0 0.0
        %455 = vmatprep.subr.mxu0 0.0
        %456 = vmatpush1.msra.mxu0 0.0
        %457 = vmatprep.subr.mxu0 0.0
        %458 = vmatpush1.msra.mxu0 0.0
        %459 = vmatprep.subr.mxu0 0.0
        %460 = vmatpush1.msra.mxu0 0.0
        %461 = vmatprep.subr.mxu0 0.0
        %462 = vmatpush1.msra.mxu0 0.0
        %463 = vmatprep.subr.mxu0 0.0
        %464 = vmatpush1.msra.mxu0 0.0
        %465 = vmatprep.subr.mxu0 0.0
        %466 = vmatpush1.msra.mxu0 0.0
        %467 = vmatprep.subr.mxu0 0.0
        %468 = vmatpush1.msra.mxu0 0.0
        %469 = vmatprep.subr.mxu0 0.0
        %470 = vmatpush1.msra.mxu0 0.0
        %471 = vmatprep.subr.mxu0 0.0
        %472 = vmatpush1.msra.mxu0 0.0
        %473 = vmatprep.subr.mxu0 0.0
        %474 = vmatpush1.msra.mxu0 0.0
        %475 = vmatprep.subr.mxu0 0.0
        %476 = vmatpush1.msra.mxu0 0.0
        %477 = vmatprep.subr.mxu0 0.0
        %478 = vmatpush1.msra.mxu0 0.0
        %479 = vmatprep.subr.mxu0 0.0
        %480 = vmatpush1.msra.mxu0 0.0
        %481 = vmatprep.subr.mxu0 0.0
        %482 = vmatpush1.msra.mxu0 0.0
        %483 = vmatprep.subr.mxu0 0.0
        %484 = vmatpush1.msra.mxu0 0.0
        %485 = vmatprep.subr.mxu0 0.0
        %486 = vmatpush1.msra.mxu0 0.0
        %487 = vmatprep.subr.mxu0 0.0
        %488 = vmatpush1.msra.mxu0 0.0
        %489 = vmatprep.subr.mxu0 0.0
        %490 = vmatpush1.msra.mxu0 0.0
        %491 = vmatprep.subr.mxu0 0.0
        %492 = vmatpush1.msra.mxu0 0.0
        %493 = vmatprep.subr.mxu0 0.0
        %494 = vmatpush1.msra.mxu0 0.0
        %495 = vmatprep.mubr.f32.mxu0 0.0
        %496 = vmatmul.mubr.f32.gmra.mrb[0].mxu0 %v429
        %v497 = vpop.f32.mrb[0].mxu0
        %v498 = vadd.f32 %v425, %v497
        %v499 = vpop.f32.mrb[0].mxu0
        %500 = vdwg.mxu0
        %v501 = vmax.f32 %v498, 0.0
        %v502 = vadd.f32 %v501, %v402
        %v503 = vmax.f32 %v502, 0.0
        %vm504 = vcmask 130048
        %505 = vst.msk [vmem:[%s264] sm:$0xff] %vm504, %v503
        %s506 = sand.u32 %s175, 1
        %s507 = scalar_lea.sflag [#allocation5], %s506
        %s508 = sand.u32 %s175, 1
        %s509 = smul.addr %s508, 8
        %s510 = scalar_lea.vmem [#allocation4], %s509
        // Predicated region
        $region49: #{tpu_custom_call.1} parent=43 // pred_check
          %p511 = pneg %p185
        $region50: #{tpu_custom_call.1} parent=43 // pred_check_branch
          %513 = sbr.rel (%p511) target = $region52
        $region51: #{tpu_custom_call.1} parent=43 // pred_region
          %s515 = ssub.s32 128, 128
          %516 = vsyncadd %s507, %s515
          %s517 = sadd.s32 %s25, %s24
          %s518 = smul.addr %s517, 128
          %s519 = scalar_lea.hbm %s6, %s518
          %s521 = sshll.u32 %s510, 4
          %s522 = int_to_ptr.vmem [resolvable:$true] %s521
          %524 = dma.vmem_to_hbm [thread:$0]  %s522, 128, %s519, %s507
        $region52: #{tpu_custom_call.1} parent=43 // pred_fallthru
          _
      $region44: #{tpu_custom_call.1} parent=5 // pred_fallthru
        _
      %p525 = scmp.le.s32.totalorder 2, %s15
      // Predicated region
      $region53: #{tpu_custom_call.1} parent=5 // pred_check
        %p526 = pneg %p525
      $region54: #{tpu_custom_call.1} parent=5 // pred_check_branch
        %528 = sbr.rel (%p526) target = $region56
      $region55: #{tpu_custom_call.1} parent=5 // pred_region
        %s529 = ssub.s32 %s15, 2
        // Predicated region
        $region57: #{tpu_custom_call.1} parent=55 // pred_check
          %p530 = pneg %p191
        $region58: #{tpu_custom_call.1} parent=55 // pred_check_branch
          %532 = sbr.rel (%p530) target = $region60
        $region59: #{tpu_custom_call.1} parent=55 // pred_region
          %s533 = sand.u32 %s176, 1
          %s534 = scalar_lea.sflag [#allocation5], %s533
          %s535 = sand.u32 %s176, 1
          %s536 = smul.addr %s535, 8
          %s537 = scalar_lea.vmem [#allocation4], %s536
          %538 = dma.done %s534, 128
        $region60: #{tpu_custom_call.1} parent=55 // pred_fallthru
          _
      $region56: #{tpu_custom_call.1} parent=5 // pred_fallthru
        _
    $region6: #{tpu_custom_call.1} parent=1 // loop_footer
      %s19 = sadd.s32 1, %s15
    $region7: #{tpu_custom_call.1} parent=1 // loop_footer_branch
      %14 = sbr.rel target = $region3
    $region8: #{tpu_custom_call.1} parent=1 // loop_exit
      _
    %539 = vsyncpa [#allocation5], 1
    %s540 = scalar_lea.sflag [#allocation5], 1
    %541 = vsyncpa %s540, 1

</llo_original>
